<compile_context>
chip_gen: v7x
topology: tpu7x:2x2x1
jax: 0.10.0
libtpu: 0.0.40
codegen_flags: <defaults>
</compile_context>

<pallas_src>
import functools

import numpy as np
import jax
import jax.numpy as jnp
from jax.experimental import pallas as pl
from jax.experimental.pallas import tpu as pltpu


# ----------------------------------------------------------------------------
# Fused Pallas kernel (per-sample grid step): both residual blocks + pool + upsample
# ----------------------------------------------------------------------------
def _head_kernel(x_ref, w1_ref, w2_ref, misc_ref, o_ref, *,
                 h_rows, win_c, w1c1, w2c2, out_len):
    bf16 = jnp.bfloat16

    def shift_cat(a, pad_cols=0):
        # Lane-concat [a[r-1] | a[r] | a[r+1]] with zero rows at the sample's H
        # boundaries (padding=1 in H).  Pure data movement; no MXU work.
        z = jnp.zeros((1, a.shape[1]), a.dtype)
        up = jnp.concatenate([z, a[:-1, :]], axis=0)     # row r <- a[r-1]  (kh=0)
        dn = jnp.concatenate([a[1:, :], z], axis=0)      # row r <- a[r+1]  (kh=2)
        parts = [up, a, dn]
        if pad_cols:
            parts.append(jnp.zeros((a.shape[0], pad_cols), a.dtype))
        return jnp.concatenate(parts, axis=1)

    def mm(a, b):
        # bf16 MXU operands, f32 accumulation.
        return jnp.dot(a.astype(bf16), b, preferred_element_type=jnp.float32)

    x = x_ref[0]                                          # (H, W*Cin) f32

    # Static slices of the packed constants (zero-cost ref views).
    upT = misc_ref[0:h_rows, 0:out_len]                   # (H, out_len) f32
    b11 = misc_ref[h_rows:h_rows + 1, 0:w1c1]             # (1, W1*C1)
    b1 = misc_ref[h_rows + 1:h_rows + 2, 0:w1c1]
    b21 = misc_ref[h_rows + 2:h_rows + 3, 0:w2c2]
    b2 = misc_ref[h_rows + 3:h_rows + 4, 0:w2c2]

    w11 = w1_ref[0:3 * win_c, :]                          # (3*W*Cin,  W1*C1) bf16
    w12 = w1_ref[3 * win_c:3 * win_c + 3 * w1c1, :]       # (3*W1*C1,  W1*C1)
    wsc1 = w1_ref[3 * win_c + 3 * w1c1:
                  3 * win_c + 3 * w1c1 + win_c, :]        # (W*Cin,    W1*C1)

    w21 = w2_ref[0:3 * w1c1, :]                           # (3*W1*C1,  W2*C2) bf16
    w22 = w2_ref[3 * w1c1:3 * w1c1 + 4 * w2c2, :]         # (4*W2*C2,  W2*C2) (last rows zero)
    wsc2 = w2_ref[3 * w1c1 + 4 * w2c2:
                  3 * w1c1 + 4 * w2c2 + w1c1, :]          # (W1*C1,    W2*C2)

    # ---- residual block 1 (Cin -> C1, stride (1,2)); BN folded into weights/biases ----
    h1 = jnp.maximum(mm(shift_cat(x), w11) + b11, 0.0)                       # (H, W1*C1)
    y1 = jnp.maximum(mm(shift_cat(h1), w12) + b1 + mm(x, wsc1), 0.0)         # (H, W1*C1)

    # ---- residual block 2 (C1 -> num_classes, stride (1,2)) ----
    h2 = jnp.maximum(mm(shift_cat(y1), w21) + b21, 0.0)                      # (H, W2)
    y2 = jnp.maximum(mm(shift_cat(h2, pad_cols=w2c2), w22) + b2
                     + mm(y1, wsc2), 0.0)                                    # (H, W2)

    # ---- AvgPool2d((1, W2)) + Flatten + linear Upsample; lane-dense store ----
    pooled = jnp.mean(y2, axis=1, keepdims=True)                             # (H, 1)
    o_ref[0] = jnp.sum(upT * pooled, axis=0, keepdims=True)                  # (1, out_len)


# ----------------------------------------------------------------------------
# Host-side (one-time) constant construction
# ----------------------------------------------------------------------------
def _bn_fold(bias, bn, eps=1e-5):
    g = np.asarray(bn["g"], np.float32)
    b = np.asarray(bn["b"], np.float32)
    m = np.asarray(bn["m"], np.float32)
    v = np.asarray(bn["v"], np.float32)
    scale = g / np.sqrt(v + eps)
    bias = np.zeros_like(m) if bias is None else np.asarray(bias, np.float32)
    shift = (bias - m) * scale + b
    return scale, shift


def _conv_as_col_matrices(w_oihw, scale, w_in, stride_w, pad_w):
    """Per-kh matrices mapping (w, cin) columns -> (wo, cout) columns.

    Folds kw taps, W zero-padding, W stride and the BN scale into the weights."""
    w_np = np.asarray(w_oihw, np.float32)
    cout, cin, kh_sz, kw_sz = w_np.shape
    w_out = (w_in + 2 * pad_w - kw_sz) // stride_w + 1
    mats = np.zeros((kh_sz, w_in * cin, w_out * cout), np.float32)
    for kh in range(kh_sz):
        for kw in range(kw_sz):
            blk = w_np[:, :, kh, kw].T * scale[None, :]          # (cin, cout)
            for wo in range(w_out):
                w_src = stride_w * wo + kw - pad_w
                if 0 <= w_src < w_in:
                    mats[kh,
                         w_src * cin:(w_src + 1) * cin,
                         wo * cout:(wo + 1) * cout] += blk
    return mats, w_out


def _linear_upsample_matrix(in_len, out_len):
    """PyTorch nn.Upsample(mode='linear', align_corners=False) as a matrix."""
    scale = in_len / out_len
    mat = np.zeros((out_len, in_len), dtype=np.float32)
    for i in range(out_len):
        src = max((i + 0.5) * scale - 0.5, 0.0)
        i0 = min(int(np.floor(src)), in_len - 1)
        i1 = min(i0 + 1, in_len - 1)
        lam = src - i0
        mat[i, i0] += 1.0 - lam
        mat[i, i1] += lam
    return mat


def build_audio_seg_head(params, in_shape, output_len, eps=1e-5):
    """Precompute packed constant slabs once; return a jitted forward callable."""
    n, c_in, h, w = in_shape
    p1, p2 = params["block1"], params["block2"]

    # ---- block 1 (Cin -> 8, stride (1,2)) ----
    sc11, sh11 = _bn_fold(p1["conv1_b"], p1["bn1"], eps)
    sc12, sh12 = _bn_fold(p1["conv2_b"], p1["bn2"], eps)
    scs1, shs1 = _bn_fold(None, p1["scbn"], eps)
    w11, w1 = _conv_as_col_matrices(p1["conv1_w"], sc11, w, 2, 1)
    w12, _ = _conv_as_col_matrices(p1["conv2_w"], sc12, w1, 1, 1)
    wsc1, w1s = _conv_as_col_matrices(p1["sc_w"], scs1, w, 2, 0)
    assert w1s == w1
    c1 = np.asarray(p1["conv1_w"]).shape[0]
    win_c = w * c_in
    w1c1 = w1 * c1

    # ---- block 2 (8 -> num_classes, stride (1,2)) ----
    sc21, sh21 = _bn_fold(p2["conv1_b"], p2["bn1"], eps)
    sc22, sh22 = _bn_fold(p2["conv2_b"], p2["bn2"], eps)
    scs2, shs2 = _bn_fold(None, p2["scbn"], eps)
    w21, w2 = _conv_as_col_matrices(p2["conv1_w"], sc21, w1, 2, 1)
    w22, _ = _conv_as_col_matrices(p2["conv2_w"], sc22, w2, 1, 1)
    wsc2, w2s = _conv_as_col_matrices(p2["sc_w"], scs2, w1, 2, 0)
    assert w2s == w2
    c_out = np.asarray(p2["conv1_w"]).shape[0]
    assert c_out == 1, "kernel supports num_classes=1 (module squeezes the class dim)"
    assert w2 == 4, "input width must pool to exactly 1 (module's assert)"
    w2c2 = w2 * c_out

    # ---- packed constant slabs ----
    # weight slab 1 (bf16): [conv1 (kh-stacked) ; conv2 (kh-stacked) ; 1x1 shortcut]
    slab_w1 = np.concatenate([w11.reshape(3 * win_c, w1c1),
                              w12.reshape(3 * w1c1, w1c1),
                              wsc1[0]], axis=0)
    # weight slab 2 (bf16): conv2 rows padded 12 -> 16 so all slice offsets stay 16-aligned
    w22_pad = np.zeros((4 * w2c2, w2c2), np.float32)
    w22_pad[:3 * w2c2] = w22.reshape(3 * w2c2, w2c2)
    slab_w2 = np.concatenate([w21.reshape(3 * w1c1, w2c2),
                              w22_pad,
                              wsc2[0]], axis=0)

    # misc slab (f32): up^T rows then the 4 folded bias rows, one common lane width.
    upm = _linear_upsample_matrix(h, output_len)                     # (out_len, H)
    wm = max(output_len, w1c1, w2c2)
    misc = np.zeros((h + 4, wm), np.float32)
    misc[:h, :output_len] = upm.T
    misc[h, :w1c1] = np.tile(sh11, w1)
    misc[h + 1, :w1c1] = np.tile(sh12, w1) + np.tile(shs1, w1)
    misc[h + 2, :w2c2] = np.tile(sh21, w2)
    misc[h + 3, :w2c2] = np.tile(sh22, w2) + np.tile(shs2, w2)

    slab_w1_j = jnp.asarray(slab_w1).astype(jnp.bfloat16)
    slab_w2_j = jnp.asarray(slab_w2).astype(jnp.bfloat16)
    misc_j = jnp.asarray(misc)

    kernel = functools.partial(_head_kernel, h_rows=h, win_c=win_c,
                               w1c1=w1c1, w2c2=w2c2, out_len=output_len)

    const_specs = [
        pl.BlockSpec(slab_w1_j.shape, lambda i: (0, 0)),   # fetched once (block idx constant)
        pl.BlockSpec(slab_w2_j.shape, lambda i: (0, 0)),
        pl.BlockSpec(misc_j.shape, lambda i: (0, 0)),
    ]
    out_shape = jax.ShapeDtypeStruct((n, 1, output_len), jnp.float32)

    def apply(x_nchw):
        # NCHW -> (N, H, W*C) with channel minor (matches the folded conv matrices).
        x0 = jnp.transpose(x_nchw, (0, 2, 3, 1)).reshape(n, h, win_c).astype(jnp.float32)
        out = pl.pallas_call(
            kernel,
            out_shape=out_shape,
            grid=(n,),                                     # one sample per grid step
            in_specs=[pl.BlockSpec((1, h, win_c), lambda i: (i, 0, 0))] + const_specs,
            out_specs=pl.BlockSpec((1, 1, output_len), lambda i: (i, 0, 0)),
            compiler_params=pltpu.CompilerParams(
                dimension_semantics=("parallel",)),        # both TCs on v7x
        )(x0, slab_w1_j, slab_w2_j, misc_j)
        return out.reshape(n, output_len)                  # == module's x.squeeze()

    return jax.jit(apply)


# ----------------------------------------------------------------------------
# Pure-JAX reference (for correctness check)
# ----------------------------------------------------------------------------
def conv2d_ref(x, w, b, stride, pad):
    out = jax.lax.conv_general_dilated(
        x, w, window_strides=stride, padding=[(pad, pad), (pad, pad)],
        dimension_numbers=("NCHW", "OIHW", "NCHW"))
    if b is not None:
        out = out + b[None, :, None, None]
    return out


def bn_ref(x, bn, eps=1e-5):
    g, b, m, v = (bn[k][None, :, None, None] for k in ("g", "b", "m", "v"))
    return (x - m) / jnp.sqrt(v + eps) * g + b


def residual_block_ref(x, p, stride):
    out = jnp.maximum(bn_ref(conv2d_ref(x, p["conv1_w"], p["conv1_b"], stride, 1), p["bn1"]), 0.0)
    out = bn_ref(conv2d_ref(out, p["conv2_w"], p["conv2_b"], (1, 1), 1), p["bn2"])
    sc = bn_ref(conv2d_ref(x, p["sc_w"], None, stride, 0), p["scbn"])
    return jnp.maximum(out + sc, 0.0)


def audio_seg_head_ref(x, params, output_len):
    h = residual_block_ref(x, params["block1"], (1, 2))
    h = residual_block_ref(h, params["block2"], (1, 2))
    h = jnp.mean(h, axis=-1, keepdims=True)                  # AvgPool2d((1,4)) -> width 1
    assert h.shape[-1] == 1
    xf = h.reshape(h.shape[0], h.shape[1], h.shape[2])       # Flatten(start_dim=2)
    m_up = jnp.asarray(_linear_upsample_matrix(xf.shape[-1], output_len))
    out = jnp.einsum("oh,nch->nco", m_up, xf)
    return out[:, 0, :]                                      # squeeze()


# ----------------------------------------------------------------------------
# Deterministic parameter init
# ----------------------------------------------------------------------------
def _bn_init(c, tag):
    ar = jnp.arange(c, dtype=jnp.float32)
    return dict(g=1.0 + 0.05 * ar,
                b=0.02 * ar - 0.01 * tag,
                m=0.03 * (ar - c / 2.0),
                v=1.0 + 0.1 * ar)


def init_block(key, cin, cout):
    k = jax.random.split(key, 3)
    return dict(
        conv1_w=0.15 * jax.random.normal(k[0], (cout, cin, 3, 3), jnp.float32),
        conv1_b=0.01 * jnp.arange(cout, dtype=jnp.float32),
        bn1=_bn_init(cout, 0),
        conv2_w=0.15 * jax.random.normal(k[1], (cout, cout, 3, 3), jnp.float32),
        conv2_b=-0.01 * jnp.arange(cout, dtype=jnp.float32),
        bn2=_bn_init(cout, 1),
        sc_w=0.15 * jax.random.normal(k[2], (cout, cin, 1, 1), jnp.float32),
        scbn=_bn_init(cout, 2),
    )


if __name__ == "__main__":
    key = jax.random.PRNGKey(0)
    kx, k1, k2 = jax.random.split(key, 3)

    # Input width must be 16 so the AvgPool output width is exactly 1 (module's assert).
    N, C, H, W = 2, 4, 16, 16
    output_len = 64
    num_classes = 1

    x = jax.random.normal(kx, (N, C, H, W), jnp.float32)
    params = dict(block1=init_block(k1, C, 8),
                  block2=init_block(k2, 8, num_classes))

    head = build_audio_seg_head(params, (N, C, H, W), output_len)
    out = jax.block_until_ready(head(x))
    assert out.shape == (N, output_len), out.shape

    ref = audio_seg_head_ref(x, params, output_len)
    # bf16 MXU operands (f32 accumulate) -> relaxed tolerance.
    np.testing.assert_allclose(np.asarray(out), np.asarray(ref), rtol=3e-2, atol=3e-2)

    print("KERNEL_OK")
</pallas_src>

<mosaic_0001>
module attributes {stable_mosaic.version = 11 : i64} {
  func.func @_head_kernel(%arg0: i32, %arg1: memref<1x16x64xf32, #tpu.memory_space<vmem>>, %arg2: memref<448x64xbf16, #tpu.memory_space<vmem>>, %arg3: memref<272x4xbf16, #tpu.memory_space<vmem>>, %arg4: memref<20x64xf32, #tpu.memory_space<vmem>>, %arg5: memref<1x1x64xf32, #tpu.memory_space<vmem>>) attributes {dimension_semantics = [#tpu.dimension_semantics<parallel>], iteration_bounds = array<i64: 2>, scalar_prefetch = 0 : i64, scratch_operands = 0 : i64, tpu.core_type = #tpu.core_type<tc>, window_params = [{transform_indices = @transform_0, window_bounds = array<i64: 1, 16, 64>}, {pipeline_mode = #tpu.pipeline_mode<synchronous>, transform_indices = @transform_1, window_bounds = array<i64: 448, 64>}, {pipeline_mode = #tpu.pipeline_mode<synchronous>, transform_indices = @transform_2, window_bounds = array<i64: 272, 4>}, {pipeline_mode = #tpu.pipeline_mode<synchronous>, transform_indices = @transform_3, window_bounds = array<i64: 20, 64>}, {transform_indices = @transform_4, window_bounds = array<i64: 1, 1, 64>}]} {
    %c0 = arith.constant 0 : index
    %c0_0 = arith.constant 0 : index
    %c0_1 = arith.constant 0 : index
    %0 = vector.load %arg1[%c0, %c0_0, %c0_1] : memref<1x16x64xf32, #tpu.memory_space<vmem>>, vector<1x16x64xf32>
    %1 = vector.shape_cast %0 : vector<1x16x64xf32> to vector<16x64xf32>
    %c0_2 = arith.constant 0 : index
    %c0_3 = arith.constant 0 : index
    %2 = vector.load %arg4[%c0_2, %c0_3] : memref<20x64xf32, #tpu.memory_space<vmem>>, vector<16x64xf32>
    %c16 = arith.constant 16 : index
    %c0_4 = arith.constant 0 : index
    %3 = vector.load %arg4[%c16, %c0_4] : memref<20x64xf32, #tpu.memory_space<vmem>>, vector<1x64xf32>
    %c17 = arith.constant 17 : index
    %c0_5 = arith.constant 0 : index
    %4 = vector.load %arg4[%c17, %c0_5] : memref<20x64xf32, #tpu.memory_space<vmem>>, vector<1x64xf32>
    %c18 = arith.constant 18 : index
    %c0_6 = arith.constant 0 : index
    %5 = vector.load %arg4[%c18, %c0_6] : memref<20x64xf32, #tpu.memory_space<vmem>>, vector<1x4xf32>
    %c19 = arith.constant 19 : index
    %c0_7 = arith.constant 0 : index
    %6 = vector.load %arg4[%c19, %c0_7] : memref<20x64xf32, #tpu.memory_space<vmem>>, vector<1x4xf32>
    %c0_8 = arith.constant 0 : index
    %c0_9 = arith.constant 0 : index
    %7 = vector.load %arg2[%c0_8, %c0_9] : memref<448x64xbf16, #tpu.memory_space<vmem>>, vector<192x64xbf16>
    %c192 = arith.constant 192 : index
    %c0_10 = arith.constant 0 : index
    %8 = vector.load %arg2[%c192, %c0_10] : memref<448x64xbf16, #tpu.memory_space<vmem>>, vector<192x64xbf16>
    %c384 = arith.constant 384 : index
    %c0_11 = arith.constant 0 : index
    %9 = vector.load %arg2[%c384, %c0_11] : memref<448x64xbf16, #tpu.memory_space<vmem>>, vector<64x64xbf16>
    %c0_12 = arith.constant 0 : index
    %c0_13 = arith.constant 0 : index
    %10 = vector.load %arg3[%c0_12, %c0_13] : memref<272x4xbf16, #tpu.memory_space<vmem>>, vector<192x4xbf16>
    %c192_14 = arith.constant 192 : index
    %c0_15 = arith.constant 0 : index
    %11 = vector.load %arg3[%c192_14, %c0_15] : memref<272x4xbf16, #tpu.memory_space<vmem>>, vector<16x4xbf16>
    %c208 = arith.constant 208 : index
    %c0_16 = arith.constant 0 : index
    %12 = vector.load %arg3[%c208, %c0_16] : memref<272x4xbf16, #tpu.memory_space<vmem>>, vector<64x4xbf16>
    %cst = arith.constant 0.000000e+00 : f32
    %13 = vector.broadcast %cst : f32 to vector<1x64xf32>
    %14 = vector.extract_strided_slice %1 {offsets = [0, 0], sizes = [15, 64], strides = [1, 1]} : vector<16x64xf32> to vector<15x64xf32>
    %15 = tpu.concatenate %13, %14 in 0 : vector<1x64xf32>, vector<15x64xf32> -> vector<16x64xf32>
    %16 = vector.extract_strided_slice %1 {offsets = [1, 0], sizes = [15, 64], strides = [1, 1]} : vector<16x64xf32> to vector<15x64xf32>
    %17 = tpu.concatenate %16, %13 in 0 : vector<15x64xf32>, vector<1x64xf32> -> vector<16x64xf32>
    %18 = tpu.concatenate %15, %1, %17 in 1 : vector<16x64xf32>, vector<16x64xf32>, vector<16x64xf32> -> vector<16x192xf32>
    %19 = arith.truncf %18 : vector<16x192xf32> to vector<16x192xbf16>
    %cst_17 = arith.constant dense<0.000000e+00> : vector<16x64xf32>
    %20 = tpu.matmul %19, %7, %cst_17 {dimension_numbers = #tpu.dot_dimension_numbers<[1], [0], [0], [1], [0, 0, 1, 1], [], []>} : vector<16x192xbf16>, vector<192x64xbf16>, vector<16x64xf32> -> vector<16x64xf32>
    %21 = vector.broadcast %3 : vector<1x64xf32> to vector<16x64xf32>
    %22 = arith.addf %20, %21 : vector<16x64xf32>
    %cst_18 = arith.constant 0.000000e+00 : f32
    %23 = vector.broadcast %cst_18 : f32 to vector<16x64xf32>
    %24 = arith.maximumf %22, %23 : vector<16x64xf32>
    %cst_19 = arith.constant 0.000000e+00 : f32
    %25 = vector.broadcast %cst_19 : f32 to vector<1x64xf32>
    %26 = vector.extract_strided_slice %24 {offsets = [0, 0], sizes = [15, 64], strides = [1, 1]} : vector<16x64xf32> to vector<15x64xf32>
    %27 = tpu.concatenate %25, %26 in 0 : vector<1x64xf32>, vector<15x64xf32> -> vector<16x64xf32>
    %28 = vector.extract_strided_slice %24 {offsets = [1, 0], sizes = [15, 64], strides = [1, 1]} : vector<16x64xf32> to vector<15x64xf32>
    %29 = tpu.concatenate %28, %25 in 0 : vector<15x64xf32>, vector<1x64xf32> -> vector<16x64xf32>
    %30 = tpu.concatenate %27, %24, %29 in 1 : vector<16x64xf32>, vector<16x64xf32>, vector<16x64xf32> -> vector<16x192xf32>
    %31 = arith.truncf %30 : vector<16x192xf32> to vector<16x192xbf16>
    %cst_20 = arith.constant dense<0.000000e+00> : vector<16x64xf32>
    %32 = tpu.matmul %31, %8, %cst_20 {dimension_numbers = #tpu.dot_dimension_numbers<[1], [0], [0], [1], [0, 0, 1, 1], [], []>} : vector<16x192xbf16>, vector<192x64xbf16>, vector<16x64xf32> -> vector<16x64xf32>
    %33 = vector.broadcast %4 : vector<1x64xf32> to vector<16x64xf32>
    %34 = arith.addf %32, %33 : vector<16x64xf32>
    %35 = arith.truncf %1 : vector<16x64xf32> to vector<16x64xbf16>
    %cst_21 = arith.constant dense<0.000000e+00> : vector<16x64xf32>
    %36 = tpu.matmul %35, %9, %cst_21 {dimension_numbers = #tpu.dot_dimension_numbers<[1], [0], [0], [1], [0, 0, 1, 1], [], []>} : vector<16x64xbf16>, vector<64x64xbf16>, vector<16x64xf32> -> vector<16x64xf32>
    %37 = arith.addf %34, %36 : vector<16x64xf32>
    %cst_22 = arith.constant 0.000000e+00 : f32
    %38 = vector.broadcast %cst_22 : f32 to vector<16x64xf32>
    %39 = arith.maximumf %37, %38 : vector<16x64xf32>
    %cst_23 = arith.constant 0.000000e+00 : f32
    %40 = vector.broadcast %cst_23 : f32 to vector<1x64xf32>
    %41 = vector.extract_strided_slice %39 {offsets = [0, 0], sizes = [15, 64], strides = [1, 1]} : vector<16x64xf32> to vector<15x64xf32>
    %42 = tpu.concatenate %40, %41 in 0 : vector<1x64xf32>, vector<15x64xf32> -> vector<16x64xf32>
    %43 = vector.extract_strided_slice %39 {offsets = [1, 0], sizes = [15, 64], strides = [1, 1]} : vector<16x64xf32> to vector<15x64xf32>
    %44 = tpu.concatenate %43, %40 in 0 : vector<15x64xf32>, vector<1x64xf32> -> vector<16x64xf32>
    %45 = tpu.concatenate %42, %39, %44 in 1 : vector<16x64xf32>, vector<16x64xf32>, vector<16x64xf32> -> vector<16x192xf32>
    %46 = arith.truncf %45 : vector<16x192xf32> to vector<16x192xbf16>
    %cst_24 = arith.constant dense<0.000000e+00> : vector<16x4xf32>
    %47 = tpu.matmul %46, %10, %cst_24 {dimension_numbers = #tpu.dot_dimension_numbers<[1], [0], [0], [1], [0, 0, 1, 1], [], []>} : vector<16x192xbf16>, vector<192x4xbf16>, vector<16x4xf32> -> vector<16x4xf32>
    %48 = vector.broadcast %5 : vector<1x4xf32> to vector<16x4xf32>
    %49 = arith.addf %47, %48 : vector<16x4xf32>
    %cst_25 = arith.constant 0.000000e+00 : f32
    %50 = vector.broadcast %cst_25 : f32 to vector<16x4xf32>
    %51 = arith.maximumf %49, %50 : vector<16x4xf32>
    %cst_26 = arith.constant 0.000000e+00 : f32
    %52 = vector.broadcast %cst_26 : f32 to vector<1x4xf32>
    %53 = vector.extract_strided_slice %51 {offsets = [0, 0], sizes = [15, 4], strides = [1, 1]} : vector<16x4xf32> to vector<15x4xf32>
    %54 = tpu.concatenate %52, %53 in 0 : vector<1x4xf32>, vector<15x4xf32> -> vector<16x4xf32>
    %55 = vector.extract_strided_slice %51 {offsets = [1, 0], sizes = [15, 4], strides = [1, 1]} : vector<16x4xf32> to vector<15x4xf32>
    %56 = tpu.concatenate %55, %52 in 0 : vector<15x4xf32>, vector<1x4xf32> -> vector<16x4xf32>
    %cst_27 = arith.constant 0.000000e+00 : f32
    %57 = vector.broadcast %cst_27 : f32 to vector<16x4xf32>
    %58 = tpu.concatenate %54, %51, %56, %57 in 1 : vector<16x4xf32>, vector<16x4xf32>, vector<16x4xf32>, vector<16x4xf32> -> vector<16x16xf32>
    %59 = arith.truncf %58 : vector<16x16xf32> to vector<16x16xbf16>
    %cst_28 = arith.constant dense<0.000000e+00> : vector<16x4xf32>
    %60 = tpu.matmul %59, %11, %cst_28 {dimension_numbers = #tpu.dot_dimension_numbers<[1], [0], [0], [1], [0, 0, 1, 1], [], []>} : vector<16x16xbf16>, vector<16x4xbf16>, vector<16x4xf32> -> vector<16x4xf32>
    %61 = vector.broadcast %6 : vector<1x4xf32> to vector<16x4xf32>
    %62 = arith.addf %60, %61 : vector<16x4xf32>
    %63 = arith.truncf %39 : vector<16x64xf32> to vector<16x64xbf16>
    %cst_29 = arith.constant dense<0.000000e+00> : vector<16x4xf32>
    %64 = tpu.matmul %63, %12, %cst_29 {dimension_numbers = #tpu.dot_dimension_numbers<[1], [0], [0], [1], [0, 0, 1, 1], [], []>} : vector<16x64xbf16>, vector<64x4xbf16>, vector<16x4xf32> -> vector<16x4xf32>
    %65 = arith.addf %62, %64 : vector<16x4xf32>
    %cst_30 = arith.constant 0.000000e+00 : f32
    %66 = vector.broadcast %cst_30 : f32 to vector<16x4xf32>
    %67 = arith.maximumf %65, %66 : vector<16x4xf32>
    %cst_31 = arith.constant dense<0.000000e+00> : vector<16xf32>
    %68 = vector.multi_reduction <add>, %67, %cst_31 [1] : vector<16x4xf32> to vector<16xf32>
    %69 = vector.shape_cast %68 : vector<16xf32> to vector<16x1xf32>
    %cst_32 = arith.constant 4.000000e+00 : f32
    %70 = vector.broadcast %cst_32 : f32 to vector<16x1xf32>
    %71 = arith.divf %69, %70 : vector<16x1xf32>
    %72 = vector.broadcast %71 : vector<16x1xf32> to vector<16x64xf32>
    %73 = arith.mulf %2, %72 : vector<16x64xf32>
    %cst_33 = arith.constant dense<0.000000e+00> : vector<64xf32>
    %74 = vector.multi_reduction <add>, %73, %cst_33 [0] : vector<16x64xf32> to vector<64xf32>
    %75 = vector.shape_cast %74 : vector<64xf32> to vector<1x64xf32>
    %c0_34 = arith.constant 0 : index
    %c0_35 = arith.constant 0 : index
    %c0_36 = arith.constant 0 : index
    %76 = vector.load %arg5[%c0_34, %c0_35, %c0_36] : memref<1x1x64xf32, #tpu.memory_space<vmem>>, vector<1x1x64xf32>
    %77 = vector.shape_cast %76 : vector<1x1x64xf32> to vector<1x64xf32>
    %78 = vector.shape_cast %75 : vector<1x64xf32> to vector<1x1x64xf32>
    tpu.vector_store %arg5[%c0_34, %c0_35, %c0_36], %78 {strides = array<i32>} : memref<1x1x64xf32, #tpu.memory_space<vmem>>, vector<1x1x64xf32>,
    return
  }
  func.func @transform_0(%arg0: i32) -> (i32, i32, i32) {
    %c0_i32 = arith.constant 0 : i32
    %c0_i32_0 = arith.constant 0 : i32
    %c0_i32_1 = arith.constant 0 : i32
    return %arg0, %c0_i32, %c0_i32_0 : i32, i32, i32
  }
  func.func @transform_1(%arg0: i32) -> (i32, i32) {
    %c0_i32 = arith.constant 0 : i32
    %c0_i32_0 = arith.constant 0 : i32
    %c0_i32_1 = arith.constant 0 : i32
    return %c0_i32, %c0_i32_0 : i32, i32
  }
  func.func @transform_2(%arg0: i32) -> (i32, i32) {
    %c0_i32 = arith.constant 0 : i32
    %c0_i32_0 = arith.constant 0 : i32
    %c0_i32_1 = arith.constant 0 : i32
    return %c0_i32, %c0_i32_0 : i32, i32
  }
  func.func @transform_3(%arg0: i32) -> (i32, i32) {
    %c0_i32 = arith.constant 0 : i32
    %c0_i32_0 = arith.constant 0 : i32
    %c0_i32_1 = arith.constant 0 : i32
    return %c0_i32, %c0_i32_0 : i32, i32
  }
  func.func @transform_4(%arg0: i32) -> (i32, i32, i32) {
    %c0_i32 = arith.constant 0 : i32
    %c0_i32_0 = arith.constant 0 : i32
    %c0_i32_1 = arith.constant 0 : i32
    return %arg0, %c0_i32, %c0_i32_0 : i32, i32, i32
  }
}

</mosaic_0001>

<llo_original>
// kernel: apply.1
$region0: #{apply.1}
  #allocation0 [shape = 'u32[]', space=smem, size = 0x4, offset = 0x4, fixed_abs, tag = 'smem constant byte address 0x4 - core index']
  #allocation1 [shape = 'u32[144,128]{1,0:T(1,128)}', space=vmem, size = 0x12000, scoped, tag = 'internal scratch']
  %s0 = inlined_call_operand.vmem [shape: f32[2,16,64], index: 0, kind: input, shape index: {}]
  %s1 = inlined_call_operand.vmem [shape: bf16[448,64], index: 1, kind: input, shape index: {}]
  %s2 = inlined_call_operand.vmem [shape: bf16[272,4], index: 2, kind: input, shape index: {}]
  %s3 = inlined_call_operand.vmem [shape: f32[20,64], index: 3, kind: input, shape index: {}]
  %s4 = inlined_call_operand.hbm [shape: f32[2,1,64], index: 4, kind: output, shape index: {}]
  %s5 = sld [smem:[#allocation0]]
  $region49: #{apply.1} parent=0
    _
  %s7 = ssub.s32 1, %s5
  %s8 = scalar_select 0, %s7, %s5
  $region1: #{apply.1} parent=0
    #allocation2 [shape = 'u8[1024]{0}', space=vmem, size = 0x400, scoped, tag = 'output window, operand 0']
    #allocation3 [shape = 's32[2]{0}', space=sflag, size = 0x8, scoped, tag = 'scoped memory for apply.1']
    %9 = vsyncpa [#allocation3], 0
    %s10 = scalar_lea.sflag [#allocation3], 1
    %11 = vsyncpa %s10, 0
    loop: start=0, step=1, limit=4
    $region2: #{apply.1} parent=1 // loop_pre_header
      _
    $region3: #{apply.1} parent=1 // loop_header
      %s13 = sphi 0, %s17
      %p14 = scmp.ge.s32.totalorder %s13, 4
      %s23 = sphi 0, %s25
      %s26 = sphi 0, %s23
      %s27 = sphi 0, %s26
      %s43 = sphi 0, %s27
      %s47 = sphi 0, %s47
      %s49 = sphi 0, %s47
      %s50 = sphi 0, %s49
      %s64 = sphi 0, %s50
      %s68 = sphi 0, %s68
      %s70 = sphi 0, %s68
      %s71 = sphi 0, %s70
      %s85 = sphi 0, %s71
      %s89 = sphi 0, %s89
      %s91 = sphi 0, %s89
      %s92 = sphi 0, %s91
      %s106 = sphi 0, %s92
      %s112 = sphi 0, %s114
      %s115 = sphi 0, %s112
      %s116 = sphi 0, %s115
      %s132 = sphi 0, %s116
    $region4: #{apply.1} parent=1 // loop_header_branch
      %16 = sbr.rel (%p14) target = $region8
    $region5: #{apply.1} parent=1 // loop_body
      %s18 = ssub.s32 %s13, 1
      %s19 = ssub.s32 %s13, 2
      %s20 = sadd.s32 %s13, 1
      %s21 = ssub.s32 %s13, %s20
      %p22 = scmp.eq.s32.totalorder %s21, 0
      %s24 = sadd.s32 %s23, 1
      %s25 = scalar_select %p22, %s23, %s24
      %p28 = pneg %p22
      %p29 = scmp.eq.s32.totalorder %s13, 1
      %p30 = por %p28, %p29
      %p31 = scmp.ne.s32.totalorder %s23, %s26
      %p32 = scmp.eq.s32.totalorder %s13, 0
      %p33 = por %p31, %p32
      %p34 = scmp.ne.s32.totalorder %s23, %s26
      %p35 = scmp.eq.s32.totalorder %s18, 1
      %p36 = por %p34, %p35
      %p37 = scmp.ne.s32.totalorder %s26, %s27
      %p38 = scmp.eq.s32.totalorder %s18, 0
      %p39 = por %p37, %p38
      %p40 = scmp.ne.s32.totalorder %s26, %s27
      %p41 = scmp.eq.s32.totalorder %s19, 1
      %p42 = por %p40, %p41
      %p44 = scmp.ne.s32.totalorder %s27, %s43
      %p45 = scmp.eq.s32.totalorder %s19, 0
      %p46 = por %p44, %p45
      %s48 = sadd.s32 %s47, 1
      %p51 = scmp.eq.s32.totalorder %s13, 1
      %p52 = scmp.ne.s32.totalorder %s47, %s49
      %p53 = scmp.eq.s32.totalorder %s13, 0
      %p54 = por %p52, %p53
      %p55 = scmp.ne.s32.totalorder %s47, %s49
      %p56 = scmp.eq.s32.totalorder %s18, 1
      %p57 = por %p55, %p56
      %p58 = scmp.ne.s32.totalorder %s49, %s50
      %p59 = scmp.eq.s32.totalorder %s18, 0
      %p60 = por %p58, %p59
      %p61 = scmp.ne.s32.totalorder %s49, %s50
      %p62 = scmp.eq.s32.totalorder %s19, 1
      %p63 = por %p61, %p62
      %p65 = scmp.ne.s32.totalorder %s50, %s64
      %p66 = scmp.eq.s32.totalorder %s19, 0
      %p67 = por %p65, %p66
      %s69 = sadd.s32 %s68, 1
      %p72 = scmp.eq.s32.totalorder %s13, 1
      %p73 = scmp.ne.s32.totalorder %s68, %s70
      %p74 = scmp.eq.s32.totalorder %s13, 0
      %p75 = por %p73, %p74
      %p76 = scmp.ne.s32.totalorder %s68, %s70
      %p77 = scmp.eq.s32.totalorder %s18, 1
      %p78 = por %p76, %p77
      %p79 = scmp.ne.s32.totalorder %s70, %s71
      %p80 = scmp.eq.s32.totalorder %s18, 0
      %p81 = por %p79, %p80
      %p82 = scmp.ne.s32.totalorder %s70, %s71
      %p83 = scmp.eq.s32.totalorder %s19, 1
      %p84 = por %p82, %p83
      %p86 = scmp.ne.s32.totalorder %s71, %s85
      %p87 = scmp.eq.s32.totalorder %s19, 0
      %p88 = por %p86, %p87
      %s90 = sadd.s32 %s89, 1
      %p93 = scmp.eq.s32.totalorder %s13, 1
      %p94 = scmp.ne.s32.totalorder %s89, %s91
      %p95 = scmp.eq.s32.totalorder %s13, 0
      %p96 = por %p94, %p95
      %p97 = scmp.ne.s32.totalorder %s89, %s91
      %p98 = scmp.eq.s32.totalorder %s18, 1
      %p99 = por %p97, %p98
      %p100 = scmp.ne.s32.totalorder %s91, %s92
      %p101 = scmp.eq.s32.totalorder %s18, 0
      %p102 = por %p100, %p101
      %p103 = scmp.ne.s32.totalorder %s91, %s92
      %p104 = scmp.eq.s32.totalorder %s19, 1
      %p105 = por %p103, %p104
      %p107 = scmp.ne.s32.totalorder %s92, %s106
      %p108 = scmp.eq.s32.totalorder %s19, 0
      %p109 = por %p107, %p108
      %s110 = ssub.s32 %s13, %s20
      %p111 = scmp.eq.s32.totalorder %s110, 0
      %s113 = sadd.s32 %s112, 1
      %s114 = scalar_select %p111, %s112, %s113
      %p117 = pneg %p111
      %p118 = scmp.eq.s32.totalorder %s13, 1
      %p119 = por %p117, %p118
      %p120 = scmp.ne.s32.totalorder %s112, %s115
      %p121 = scmp.eq.s32.totalorder %s13, 0
      %p122 = por %p120, %p121
      %p123 = scmp.ne.s32.totalorder %s112, %s115
      %p124 = scmp.eq.s32.totalorder %s18, 1
      %p125 = por %p123, %p124
      %p126 = scmp.ne.s32.totalorder %s115, %s116
      %p127 = scmp.eq.s32.totalorder %s18, 0
      %p128 = por %p126, %p127
      %p129 = scmp.ne.s32.totalorder %s115, %s116
      %p130 = scmp.eq.s32.totalorder %s19, 1
      %p131 = por %p129, %p130
      %p133 = scmp.ne.s32.totalorder %s116, %s132
      %p134 = scmp.eq.s32.totalorder %s19, 0
      %p135 = por %p133, %p134
      %p136 = scmp.le.s32.totalorder 1, %s13
      %p137 = scmp.lt.s32.totalorder %s13, 3
      %p138 = pnand %p136, %p137
      %p139 = pneg %p138
      // Predicated region
      $region9: #{apply.1} parent=5 // pred_check
        _
      $region10: #{apply.1} parent=5 // pred_check_branch
        %141 = sbr.rel (%p138) target = $region12
      $region11: #{apply.1} parent=5 // pred_region
        %s142 = ssub.s32 %s13, 1
        // Predicated region
        $region13: #{apply.1} parent=11 // pred_check
          %p143 = pneg %p60
        $region14: #{apply.1} parent=11 // pred_check_branch
          %145 = sbr.rel (%p143) target = $region16
        $region15: #{apply.1} parent=11 // pred_region
          _
        $region16: #{apply.1} parent=11 // pred_fallthru
          _
        // Predicated region
        $region17: #{apply.1} parent=11 // pred_check
          %p146 = pneg %p81
        $region18: #{apply.1} parent=11 // pred_check_branch
          %148 = sbr.rel (%p146) target = $region20
        $region19: #{apply.1} parent=11 // pred_region
          _
        $region20: #{apply.1} parent=11 // pred_fallthru
          _
        // Predicated region
        $region21: #{apply.1} parent=11 // pred_check
          %p149 = pneg %p102
        $region22: #{apply.1} parent=11 // pred_check_branch
          %151 = sbr.rel (%p149) target = $region24
        $region23: #{apply.1} parent=11 // pred_region
          _
        $region24: #{apply.1} parent=11 // pred_fallthru
          _
      $region12: #{apply.1} parent=5 // pred_fallthru
        _
      %p152 = scmp.lt.s32.totalorder %s13, 2
      // Predicated region
      $region25: #{apply.1} parent=5 // pred_check
        %p153 = pneg %p152
      $region26: #{apply.1} parent=5 // pred_check_branch
        %155 = sbr.rel (%p153) target = $region28
      $region27: #{apply.1} parent=5 // pred_region
        // Predicated region
        $region29: #{apply.1} parent=27 // pred_check
          %p156 = pneg %p33
        $region30: #{apply.1} parent=27 // pred_check_branch
          %158 = sbr.rel (%p156) target = $region32
        $region31: #{apply.1} parent=27 // pred_region
          %p159 = scmp.lt.s32.totalorder %s13, 1
          %s160 = scalar_select %p159, %s13, 1
          %s161 = smul.addr %s160, 2
          %s162 = smul.addr %s161, 8
          %s163 = scalar_lea.vmem %s0, %s162
        $region32: #{apply.1} parent=27 // pred_fallthru
          _
      $region28: #{apply.1} parent=5 // pred_fallthru
        _
      %p164 = scmp.le.s32.totalorder 1, %s13
      %p165 = scmp.lt.s32.totalorder %s13, 3
      %p166 = pnand %p164, %p165
      %p167 = pneg %p166
      // Predicated region
      $region33: #{apply.1} parent=5 // pred_check
        _
      $region34: #{apply.1} parent=5 // pred_check_branch
        %169 = sbr.rel (%p166) target = $region36
      $region35: #{apply.1} parent=5 // pred_region
        %s170 = ssub.s32 %s13, 1
        %p171 = scmp.lt.s32.totalorder %s18, 1
        %s172 = scalar_select %p171, %s18, 1
        %s173 = smul.addr %s172, 2
        %s174 = smul.addr %s173, 8
        %s175 = scalar_lea.vmem %s0, %s174
        %p176 = pneg %p39
        %p177 = pneg %p36
        %p178 = pneg %p60
        %p179 = pneg %p57
        %p180 = pneg %p81
        %p181 = pneg %p78
        %p182 = pneg %p102
        %p183 = pneg %p99
        %p184 = pneg %p128
        %p185 = pneg %p125
        %s186 = sand.u32 %s115, 1
        %s187 = scalar_lea.sflag [#allocation3], %s186
        %s188 = sand.u32 %s115, 1
        %s189 = scalar_lea.vmem [#allocation2], %s188
        %p190 = scmp.lt.s32.totalorder %s18, 1
        %s191 = scalar_select %p190, %s18, 1
        %s192 = smul.addr %s191, 2
        %s193 = smul.addr %s192, 8
        %s194 = scalar_lea.vmem %s0, %s193
        %v196 = vld [vmem:[%s194] sm:$0xff]
        %v197 = vld [vmem:[%s194 + $0x8] sm:$0xff]
        %v198 = vld [vmem:[%s3] sm:$0xff]
        %v199 = vld [vmem:[%s3 + $0x8] sm:$0xff]
        %v200 = vld [vmem:[%s3 + $0x10] sm:$0x1]
        %v201 = vld [vmem:[%s3 + $0x11] sm:$0x1]
        %v202 = vld [vmem:[%s3 + $0x12] sm:$0x1]
        %v203 = vld [vmem:[%s3 + $0x13] sm:$0x1]
        %v204 = vld [vmem:[%s1] sm:$0xf]
        %v205 = vld [vmem:[%s1 + $0x4] sm:$0xf]
        %v206 = vld [vmem:[%s1 + $0x8] sm:$0xf]
        %v207 = vld [vmem:[%s1 + $0xc] sm:$0xf]
        %v208 = vld [vmem:[%s1 + $0x10] sm:$0xf]
        %v209 = vld [vmem:[%s1 + $0x14] sm:$0xf]
        %v210 = vld [vmem:[%s1 + $0x18] sm:$0xf]
        %v211 = vld [vmem:[%s1 + $0x1c] sm:$0xf]
        %v212 = vld [vmem:[%s1 + $0x20] sm:$0xf]
        %v213 = vld [vmem:[%s1 + $0x24] sm:$0xf]
        %v214 = vld [vmem:[%s1 + $0x28] sm:$0xf]
        %v215 = vld [vmem:[%s1 + $0x2c] sm:$0xf]
        %v216 = vld [vmem:[%s1 + $0x30] sm:$0xf]
        %v217 = vld [vmem:[%s1 + $0x34] sm:$0xf]
        %v218 = vld [vmem:[%s1 + $0x38] sm:$0xf]
        %v219 = vld [vmem:[%s1 + $0x3c] sm:$0xf]
        %v220 = vld [vmem:[%s1 + $0x40] sm:$0xf]
        %v221 = vld [vmem:[%s1 + $0x44] sm:$0xf]
        %v222 = vld [vmem:[%s1 + $0x48] sm:$0xf]
        %v223 = vld [vmem:[%s1 + $0x4c] sm:$0xf]
        %v224 = vld [vmem:[%s1 + $0x50] sm:$0xf]
        %v225 = vld [vmem:[%s1 + $0x54] sm:$0xf]
        %v226 = vld [vmem:[%s1 + $0x58] sm:$0xf]
        %v227 = vld [vmem:[%s1 + $0x5c] sm:$0xf]
        %v228 = vld [vmem:[%s1 + $0x60] sm:$0xf]
        %v229 = vld [vmem:[%s1 + $0x64] sm:$0xf]
        %v230 = vld [vmem:[%s1 + $0x68] sm:$0xf]
        %v231 = vld [vmem:[%s1 + $0x6c] sm:$0xf]
        %v232 = vld [vmem:[%s1 + $0x70] sm:$0xf]
        %v233 = vld [vmem:[%s1 + $0x74] sm:$0xf]
        %v234 = vld [vmem:[%s1 + $0x78] sm:$0xf]
        %v235 = vld [vmem:[%s1 + $0x7c] sm:$0xf]
        %v236 = vld [vmem:[%s1 + $0x80] sm:$0xf]
        %v237 = vld [vmem:[%s1 + $0x84] sm:$0xf]
        %v238 = vld [vmem:[%s1 + $0x88] sm:$0xf]
        %v239 = vld [vmem:[%s1 + $0x8c] sm:$0xf]
        %v240 = vld [vmem:[%s1 + $0x90] sm:$0xf]
        %v241 = vld [vmem:[%s1 + $0x94] sm:$0xf]
        %v242 = vld [vmem:[%s1 + $0x98] sm:$0xf]
        %v243 = vld [vmem:[%s1 + $0x9c] sm:$0xf]
        %v244 = vld [vmem:[%s1 + $0xa0] sm:$0xf]
        %v245 = vld [vmem:[%s1 + $0xa4] sm:$0xf]
        %v246 = vld [vmem:[%s1 + $0xa8] sm:$0xf]
        %v247 = vld [vmem:[%s1 + $0xac] sm:$0xf]
        %v248 = vld [vmem:[%s1 + $0xb0] sm:$0xf]
        %v249 = vld [vmem:[%s1 + $0xb4] sm:$0xf]
        %v250 = vld [vmem:[%s1 + $0xb8] sm:$0xf]
        %v251 = vld [vmem:[%s1 + $0xbc] sm:$0xf]
        %v252 = vld [vmem:[%s1 + $0xc0] sm:$0xf]
        %v253 = vld [vmem:[%s1 + $0xc4] sm:$0xf]
        %v254 = vld [vmem:[%s1 + $0xc8] sm:$0xf]
        %v255 = vld [vmem:[%s1 + $0xcc] sm:$0xf]
        %v256 = vld [vmem:[%s1 + $0xd0] sm:$0xf]
        %v257 = vld [vmem:[%s1 + $0xd4] sm:$0xf]
        %v258 = vld [vmem:[%s1 + $0xd8] sm:$0xf]
        %v259 = vld [vmem:[%s1 + $0xdc] sm:$0xf]
        %v260 = vld [vmem:[%s2] sm:$0xf]
        %v261 = vld [vmem:[%s2 + $0x4] sm:$0xf]
        %v262 = vld [vmem:[%s2 + $0x8] sm:$0xf]
        %v263 = vld [vmem:[%s2 + $0xc] sm:$0xf]
        %v264 = vld [vmem:[%s2 + $0x10] sm:$0xf]
        %v265 = vld [vmem:[%s2 + $0x14] sm:$0xf]
        %v266 = vld [vmem:[%s2 + $0x18] sm:$0xf]
        %v267 = vld [vmem:[%s2 + $0x1c] sm:$0xf]
        %v268 = vld [vmem:[%s2 + $0x20] sm:$0xf]
        %v269 = vld [vmem:[%s2 + $0x24] sm:$0xf]
        %v270 = vld [vmem:[%s2 + $0x28] sm:$0xf]
        %v271 = vld [vmem:[%s2 + $0x2c] sm:$0xf]
        %v272 = vld [vmem:[%s2 + $0x30] sm:$0xf]
        %v273 = vld [vmem:[%s2 + $0x34] sm:$0xf]
        %v274 = vld [vmem:[%s2 + $0x38] sm:$0xf]
        %v275 = vld [vmem:[%s2 + $0x3c] sm:$0xf]
        %v276 = vld [vmem:[%s2 + $0x40] sm:$0xf]
        %v277 = vld [vmem:[%s2 + $0x44] sm:$0xf]
        %v278 = vld [vmem:[%s2 + $0x48] sm:$0xf]
        %v279 = vld [vmem:[%s2 + $0x4c] sm:$0xf]
        %v280 = vld [vmem:[%s2 + $0x50] sm:$0xf]
        %v281 = vld [vmem:[%s2 + $0x54] sm:$0xf]
        %v282 = vld [vmem:[%s2 + $0x58] sm:$0xf]
        %v283 = vld [vmem:[%s2 + $0x5c] sm:$0xf]
        %v284 = vld [vmem:[%s2 + $0x60] sm:$0xf]
        %v285 = vld [vmem:[%s2 + $0x64] sm:$0xf]
        %v286 = vld [vmem:[%s2 + $0x68] sm:$0xf]
        %v287 = vld [vmem:[%s2 + $0x6c] sm:$0xf]
        %v288 = vld [vmem:[%s2 + $0x70] sm:$0xf]
        %v289 = vld [vmem:[%s2 + $0x74] sm:$0xf]
        %v290 = vld [vmem:[%s2 + $0x78] sm:$0xf]
        %v291 = vld [vmem:[%s2 + $0x7c] sm:$0xf]
        %v292 = vld [vmem:[%s2 + $0x80] sm:$0xf]
        %v293 = vld [vmem:[%s2 + $0x84] sm:$0xf]
        %vm296 = vcmask 1040384
        %v297 = vrot.slane %v196, 7
        %v298 = vrot.slane %v197, 7
        %v299 = vsel %vm296, %v297, %v298
        %v302 = vsel %vm296, 0.0, %v297
        %vm303 = vcmask 1046528
        %v304 = vrot.slane %v196, 1
        %v305 = vrot.slane %v197, 1
        %v306 = vsel %vm303, %v304, %v305
        %v309 = vsel %vm303, %v305, 0.0
        %310 = vrot.lane.b32.xlu0 %v196, 64
        %v311 = vpop.permute.xlu0 %310
        %312 = vrot.lane.b32.xlu0 %v197, 64
        %v313 = vpop.permute.xlu0 %312
        %vm316 = vcmask 523264
        %v317 = vsel %vm316, %v302, %v311
        %v318 = vsel %vm316, %v299, %v313
        %v319 = vpack.c.bf16 %v318, %v317
        %v320 = vpack.c.bf16 %v309, %v306
        %v321 = vlaneseq
        %v322 = vshrl.u32 %v321, 7
        %v323 = vsub.s32 0, %v322
        %v324 = vrot.slane %v200, %v323
        %v349 = vunpack.c.l.b16 %v204
        %v350 = vunpack.c.l.b16 %v205
        %v351 = vunpack.c.l.b16 %v206
        %v352 = vunpack.c.l.b16 %v207
        %v353 = vunpack.c.l.b16 %v208
        %v354 = vunpack.c.l.b16 %v209
        %v355 = vunpack.c.l.b16 %v210
        %v356 = vunpack.c.l.b16 %v211
        %v357 = vunpack.c.l.b16 %v212
        %v358 = vunpack.c.l.b16 %v213
        %v359 = vunpack.c.l.b16 %v214
        %v360 = vunpack.c.l.b16 %v215
        %v361 = vunpack.c.l.b16 %v216
        %v362 = vunpack.c.l.b16 %v217
        %v363 = vunpack.c.l.b16 %v218
        %v364 = vunpack.c.l.b16 %v219
        %v365 = vunpack.c.l.b16 %v220
        %v366 = vunpack.c.l.b16 %v221
        %v367 = vunpack.c.l.b16 %v222
        %v368 = vunpack.c.l.b16 %v223
        %v369 = vunpack.c.l.b16 %v224
        %v370 = vunpack.c.l.b16 %v225
        %v371 = vunpack.c.l.b16 %v226
        %v372 = vunpack.c.l.b16 %v227
        %v373 = vpack.c.b16 %v350, %v349
        %v374 = vpack.c.b16 %v352, %v351
        %v375 = vpack.c.b16 %v354, %v353
        %v376 = vpack.c.b16 %v356, %v355
        %v377 = vpack.c.b16 %v358, %v357
        %v378 = vpack.c.b16 %v360, %v359
        %v379 = vpack.c.b16 %v362, %v361
        %v380 = vpack.c.b16 %v364, %v363
        %v381 = vpack.c.b16 %v366, %v365
        %v382 = vpack.c.b16 %v368, %v367
        %v383 = vpack.c.b16 %v370, %v369
        %v384 = vpack.c.b16 %v372, %v371
        %v398 = vsel %vm316, %v320, 0
        %400 = vmatprep.subr.bf16.mxu0 0
        %401 = vmatpush1.bf16.msra.mxu0 %v373
        %402 = vmatprep.subr.bf16.mxu0 0
        %403 = vmatpush1.bf16.msra.mxu0 %v374
        %404 = vmatprep.subr.bf16.mxu0 0
        %405 = vmatpush1.bf16.msra.mxu0 %v375
        %406 = vmatprep.subr.bf16.mxu0 0
        %407 = vmatpush1.bf16.msra.mxu0 %v376
        %408 = vmatprep.subr.bf16.mxu0 0
        %409 = vmatpush1.bf16.msra.mxu0 %v377
        %410 = vmatprep.subr.bf16.mxu0 0
        %411 = vmatpush1.bf16.msra.mxu0 %v378
        %412 = vmatprep.subr.bf16.mxu0 0
        %413 = vmatpush1.bf16.msra.mxu0 %v379
        %414 = vmatprep.subr.bf16.mxu0 0
        %415 = vmatpush1.bf16.msra.mxu0 %v380
        %416 = vmatprep.subr.bf16.mxu0 0
        %417 = vmatpush1.bf16.msra.mxu0 %v381
        %418 = vmatprep.subr.bf16.mxu0 0
        %419 = vmatpush1.bf16.msra.mxu0 %v382
        %420 = vmatprep.subr.bf16.mxu0 0
        %421 = vmatpush1.bf16.msra.mxu0 %v383
        %422 = vmatprep.subr.bf16.mxu0 0
        %423 = vmatpush1.bf16.msra.mxu0 %v384
        %424 = vmatprep.subr.bf16.mxu0 0
        %425 = vmatpush1.bf16.msra.mxu0 0
        %426 = vmatprep.subr.bf16.mxu0 0
        %427 = vmatpush1.bf16.msra.mxu0 0
        %428 = vmatprep.subr.bf16.mxu0 0
        %429 = vmatpush1.bf16.msra.mxu0 0
        %430 = vmatprep.subr.bf16.mxu0 0
        %431 = vmatpush1.bf16.msra.mxu0 0
        %432 = vmatprep.mubr.bf16.mxu0 %v398
        %433 = vmatmul.mubr.bf16.gmra.mrb[0].mxu0 %v319
        %v434 = vpop.f32.mrb[0].mxu0
        %v435 = vadd.f32 %v324, %v434
        %v436 = vpop.f32.mrb[0].mxu0
        %v437 = vpop.f32.mrb[0].mxu0
        %v438 = vadd.f32 %v324, %v437
        %v439 = vpop.f32.mrb[0].mxu0
        %440 = vdwg.mxu0
        %v441 = vmax.f32 %v435, 0.0
        %v442 = vmax.f32 %v438, 0.0
        %v445 = vrot.slane %v441, 7
        %v446 = vrot.slane %v442, 7
        %v447 = vsel %vm296, %v445, %v446
        %v450 = vsel %vm296, 0.0, %v445
        %v451 = vrot.slane %v441, 1
        %v452 = vrot.slane %v442, 1
        %v453 = vsel %vm303, %v451, %v452
        %v456 = vsel %vm303, %v452, 0.0
        %457 = vrot.lane.b32.xlu0 %v441, 64
        %v458 = vpop.permute.xlu0 %457
        %459 = vrot.lane.b32.xlu0 %v442, 64
        %v460 = vpop.permute.xlu0 %459
        %v463 = vsel %vm316, %v450, %v458
        %v464 = vsel %vm316, %v447, %v460
        %v465 = vpack.c.bf16 %v464, %v463
        %v466 = vpack.c.bf16 %v456, %v453
        %v467 = vlaneseq
        %v468 = vshrl.u32 %v467, 7
        %v469 = vsub.s32 0, %v468
        %v470 = vrot.slane %v201, %v469
        %v495 = vunpack.c.l.b16 %v228
        %v496 = vunpack.c.l.b16 %v229
        %v497 = vunpack.c.l.b16 %v230
        %v498 = vunpack.c.l.b16 %v231
        %v499 = vunpack.c.l.b16 %v232
        %v500 = vunpack.c.l.b16 %v233
        %v501 = vunpack.c.l.b16 %v234
        %v502 = vunpack.c.l.b16 %v235
        %v503 = vunpack.c.l.b16 %v236
        %v504 = vunpack.c.l.b16 %v237
        %v505 = vunpack.c.l.b16 %v238
        %v506 = vunpack.c.l.b16 %v239
        %v507 = vunpack.c.l.b16 %v240
        %v508 = vunpack.c.l.b16 %v241
        %v509 = vunpack.c.l.b16 %v242
        %v510 = vunpack.c.l.b16 %v243
        %v511 = vunpack.c.l.b16 %v244
        %v512 = vunpack.c.l.b16 %v245
        %v513 = vunpack.c.l.b16 %v246
        %v514 = vunpack.c.l.b16 %v247
        %v515 = vunpack.c.l.b16 %v248
        %v516 = vunpack.c.l.b16 %v249
        %v517 = vunpack.c.l.b16 %v250
        %v518 = vunpack.c.l.b16 %v251
        %v519 = vpack.c.b16 %v496, %v495
        %v520 = vpack.c.b16 %v498, %v497
        %v521 = vpack.c.b16 %v500, %v499
        %v522 = vpack.c.b16 %v502, %v501
        %v523 = vpack.c.b16 %v504, %v503
        %v524 = vpack.c.b16 %v506, %v505
        %v525 = vpack.c.b16 %v508, %v507
        %v526 = vpack.c.b16 %v510, %v509
        %v527 = vpack.c.b16 %v512, %v511
        %v528 = vpack.c.b16 %v514, %v513
        %v529 = vpack.c.b16 %v516, %v515
        %v530 = vpack.c.b16 %v518, %v517
        %v544 = vsel %vm316, %v466, 0
        %546 = vmatprep.subr.bf16.mxu0 0
        %547 = vmatpush1.bf16.msra.mxu0 %v519
        %548 = vmatprep.subr.bf16.mxu0 0
        %549 = vmatpush1.bf16.msra.mxu0 %v520
        %550 = vmatprep.subr.bf16.mxu0 0
        %551 = vmatpush1.bf16.msra.mxu0 %v521
        %552 = vmatprep.subr.bf16.mxu0 0
        %553 = vmatpush1.bf16.msra.mxu0 %v522
        %554 = vmatprep.subr.bf16.mxu0 0
        %555 = vmatpush1.bf16.msra.mxu0 %v523
        %556 = vmatprep.subr.bf16.mxu0 0
        %557 = vmatpush1.bf16.msra.mxu0 %v524
        %558 = vmatprep.subr.bf16.mxu0 0
        %559 = vmatpush1.bf16.msra.mxu0 %v525
        %560 = vmatprep.subr.bf16.mxu0 0
        %561 = vmatpush1.bf16.msra.mxu0 %v526
        %562 = vmatprep.subr.bf16.mxu0 0
        %563 = vmatpush1.bf16.msra.mxu0 %v527
        %564 = vmatprep.subr.bf16.mxu0 0
        %565 = vmatpush1.bf16.msra.mxu0 %v528
        %566 = vmatprep.subr.bf16.mxu0 0
        %567 = vmatpush1.bf16.msra.mxu0 %v529
        %568 = vmatprep.subr.bf16.mxu0 0
        %569 = vmatpush1.bf16.msra.mxu0 %v530
        %570 = vmatprep.subr.bf16.mxu0 0
        %571 = vmatpush1.bf16.msra.mxu0 0
        %572 = vmatprep.subr.bf16.mxu0 0
        %573 = vmatpush1.bf16.msra.mxu0 0
        %574 = vmatprep.subr.bf16.mxu0 0
        %575 = vmatpush1.bf16.msra.mxu0 0
        %576 = vmatprep.subr.bf16.mxu0 0
        %577 = vmatpush1.bf16.msra.mxu0 0
        %578 = vmatprep.mubr.bf16.mxu0 %v544
        %579 = vmatmul.mubr.bf16.gmra.mrb[0].mxu0 %v465
        %v580 = vpop.f32.mrb[0].mxu0
        %v581 = vadd.f32 %v470, %v580
        %v582 = vpop.f32.mrb[0].mxu0
        %v583 = vpop.f32.mrb[0].mxu0
        %v584 = vadd.f32 %v470, %v583
        %v585 = vpop.f32.mrb[0].mxu0
        %586 = vdwg.mxu0
        %v587 = vpack.c.bf16 %v197, %v196
        %v596 = vunpack.c.l.b16 %v252
        %v597 = vunpack.c.l.b16 %v253
        %v598 = vunpack.c.l.b16 %v254
        %v599 = vunpack.c.l.b16 %v255
        %v600 = vunpack.c.l.b16 %v256
        %v601 = vunpack.c.l.b16 %v257
        %v602 = vunpack.c.l.b16 %v258
        %v603 = vunpack.c.l.b16 %v259
        %v604 = vpack.c.b16 %v597, %v596
        %v605 = vpack.c.b16 %v599, %v598
        %v606 = vpack.c.b16 %v601, %v600
        %v607 = vpack.c.b16 %v603, %v602
        %v613 = vsel %vm316, %v587, 0
        %615 = vmatprep.subr.bf16.mxu0 0
        %616 = vmatpush1.bf16.msra.mxu0 %v604
        %617 = vmatprep.subr.bf16.mxu0 0
        %618 = vmatpush1.bf16.msra.mxu0 %v605
        %619 = vmatprep.subr.bf16.mxu0 0
        %620 = vmatpush1.bf16.msra.mxu0 %v606
        %621 = vmatprep.subr.bf16.mxu0 0
        %622 = vmatpush1.bf16.msra.mxu0 %v607
        %623 = vmatprep.subr.bf16.mxu0 0
        %624 = vmatpush1.bf16.msra.mxu0 0
        %625 = vmatprep.subr.bf16.mxu0 0
        %626 = vmatpush1.bf16.msra.mxu0 0
        %627 = vmatprep.subr.bf16.mxu0 0
        %628 = vmatpush1.bf16.msra.mxu0 0
        %629 = vmatprep.subr.bf16.mxu0 0
        %630 = vmatpush1.bf16.msra.mxu0 0
        %631 = vmatprep.subr.bf16.mxu0 0
        %632 = vmatpush1.bf16.msra.mxu0 0
        %633 = vmatprep.subr.bf16.mxu0 0
        %634 = vmatpush1.bf16.msra.mxu0 0
        %635 = vmatprep.subr.bf16.mxu0 0
        %636 = vmatpush1.bf16.msra.mxu0 0
        %637 = vmatprep.subr.bf16.mxu0 0
        %638 = vmatpush1.bf16.msra.mxu0 0
        %639 = vmatprep.subr.bf16.mxu0 0
        %640 = vmatpush1.bf16.msra.mxu0 0
        %641 = vmatprep.subr.bf16.mxu0 0
        %642 = vmatpush1.bf16.msra.mxu0 0
        %643 = vmatprep.subr.bf16.mxu0 0
        %644 = vmatpush1.bf16.msra.mxu0 0
        %645 = vmatprep.subr.bf16.mxu0 0
        %646 = vmatpush1.bf16.msra.mxu0 0
        %647 = vmatprep.mubr.bf16.mxu0 0
        %648 = vmatmul.mubr.bf16.gmra.mrb[0].mxu0 %v613
        %v649 = vpop.f32.mrb[0].mxu0
        %v650 = vadd.f32 0.0, %v649
        %v651 = vpop.f32.mrb[0].mxu0
        %v652 = vpop.f32.mrb[0].mxu0
        %v653 = vadd.f32 0.0, %v652
        %v654 = vpop.f32.mrb[0].mxu0
        %655 = vdwg.mxu0
        %v656 = vadd.f32 %v581, %v650
        %v657 = vadd.f32 %v584, %v653
        %v658 = vmax.f32 %v656, 0.0
        %v659 = vmax.f32 %v657, 0.0
        %v662 = vrot.slane %v658, 7
        %v663 = vrot.slane %v659, 7
        %v664 = vsel %vm296, %v662, %v663
        %v667 = vsel %vm296, 0.0, %v662
        %v668 = vrot.slane %v658, 1
        %v669 = vrot.slane %v659, 1
        %v670 = vsel %vm303, %v668, %v669
        %v673 = vsel %vm303, %v669, 0.0
        %674 = vrot.lane.b32.xlu0 %v658, 64
        %v675 = vpop.permute.xlu0 %674
        %676 = vrot.lane.b32.xlu0 %v659, 64
        %v677 = vpop.permute.xlu0 %676
        %v680 = vsel %vm316, %v667, %v675
        %v681 = vsel %vm316, %v664, %v677
        %v682 = vpack.c.bf16 %v681, %v680
        %v683 = vpack.c.bf16 %v673, %v670
        %v684 = vlaneseq
        %v685 = vshrl.u32 %v684, 7
        %v686 = vsub.s32 0, %v685
        %v687 = vrot.slane %v202, %v686
        %v712 = vunpack.c.l.b16 %v260
        %v713 = vunpack.c.l.b16 %v261
        %v714 = vunpack.c.l.b16 %v262
        %v715 = vunpack.c.l.b16 %v263
        %v716 = vunpack.c.l.b16 %v264
        %v717 = vunpack.c.l.b16 %v265
        %v718 = vunpack.c.l.b16 %v266
        %v719 = vunpack.c.l.b16 %v267
        %v720 = vunpack.c.l.b16 %v268
        %v721 = vunpack.c.l.b16 %v269
        %v722 = vunpack.c.l.b16 %v270
        %v723 = vunpack.c.l.b16 %v271
        %v724 = vunpack.c.l.b16 %v272
        %v725 = vunpack.c.l.b16 %v273
        %v726 = vunpack.c.l.b16 %v274
        %v727 = vunpack.c.l.b16 %v275
        %v728 = vunpack.c.l.b16 %v276
        %v729 = vunpack.c.l.b16 %v277
        %v730 = vunpack.c.l.b16 %v278
        %v731 = vunpack.c.l.b16 %v279
        %v732 = vunpack.c.l.b16 %v280
        %v733 = vunpack.c.l.b16 %v281
        %v734 = vunpack.c.l.b16 %v282
        %v735 = vunpack.c.l.b16 %v283
        %v736 = vpack.c.b16 %v713, %v712
        %v737 = vpack.c.b16 %v715, %v714
        %v738 = vpack.c.b16 %v717, %v716
        %v739 = vpack.c.b16 %v719, %v718
        %v740 = vpack.c.b16 %v721, %v720
        %v741 = vpack.c.b16 %v723, %v722
        %v742 = vpack.c.b16 %v725, %v724
        %v743 = vpack.c.b16 %v727, %v726
        %v744 = vpack.c.b16 %v729, %v728
        %v745 = vpack.c.b16 %v731, %v730
        %v746 = vpack.c.b16 %v733, %v732
        %v747 = vpack.c.b16 %v735, %v734
        %v761 = vsel %vm316, %v683, 0
        %763 = vmatprep.subr.bf16.mxu0 0
        %764 = vmatpush1.bf16.msra.mxu0 %v736
        %765 = vmatprep.subr.bf16.mxu0 0
        %766 = vmatpush1.bf16.msra.mxu0 %v737
        %767 = vmatprep.subr.bf16.mxu0 0
        %768 = vmatpush1.bf16.msra.mxu0 %v738
        %769 = vmatprep.subr.bf16.mxu0 0
        %770 = vmatpush1.bf16.msra.mxu0 %v739
        %771 = vmatprep.subr.bf16.mxu0 0
        %772 = vmatpush1.bf16.msra.mxu0 %v740
        %773 = vmatprep.subr.bf16.mxu0 0
        %774 = vmatpush1.bf16.msra.mxu0 %v741
        %775 = vmatprep.subr.bf16.mxu0 0
        %776 = vmatpush1.bf16.msra.mxu0 %v742
        %777 = vmatprep.subr.bf16.mxu0 0
        %778 = vmatpush1.bf16.msra.mxu0 %v743
        %779 = vmatprep.subr.bf16.mxu0 0
        %780 = vmatpush1.bf16.msra.mxu0 %v744
        %781 = vmatprep.subr.bf16.mxu0 0
        %782 = vmatpush1.bf16.msra.mxu0 %v745
        %783 = vmatprep.subr.bf16.mxu0 0
        %784 = vmatpush1.bf16.msra.mxu0 %v746
        %785 = vmatprep.subr.bf16.mxu0 0
        %786 = vmatpush1.bf16.msra.mxu0 %v747
        %787 = vmatprep.subr.bf16.mxu0 0
        %788 = vmatpush1.bf16.msra.mxu0 0
        %789 = vmatprep.subr.bf16.mxu0 0
        %790 = vmatpush1.bf16.msra.mxu0 0
        %791 = vmatprep.subr.bf16.mxu0 0
        %792 = vmatpush1.bf16.msra.mxu0 0
        %793 = vmatprep.subr.bf16.mxu0 0
        %794 = vmatpush1.bf16.msra.mxu0 0
        %795 = vmatprep.mubr.bf16.mxu0 %v761
        %796 = vmatmul.mubr.bf16.gmra.mrb[0].mxu0 %v682
        %v797 = vpop.f32.mrb[0].mxu0
        %v798 = vadd.f32 %v687, %v797
        %v799 = vpop.f32.mrb[0].mxu0
        %v800 = vpop.f32.mrb[0].mxu0
        %v801 = vadd.f32 %v687, %v800
        %v802 = vpop.f32.mrb[0].mxu0
        %803 = vdwg.mxu0
        %v804 = vmax.f32 %v798, 0.0
        %v805 = vmax.f32 %v801, 0.0
        %v808 = vrot.slane %v804, 7
        %v809 = vrot.slane %v805, 7
        %v810 = vsel %vm296, %v808, %v809
        %v813 = vsel %vm296, 0.0, %v808
        %v814 = vrot.slane %v804, 1
        %v815 = vrot.slane %v805, 1
        %v816 = vsel %vm303, %v814, %v815
        %v818 = vsel %vm303, %v815, 0.0
        %819 = vrot.lane.b32.xlu0 %v804, 4
        %v820 = vpop.permute.xlu0 %819
        %821 = vrot.lane.b32.xlu0 %v805, 4
        %v822 = vpop.permute.xlu0 %821
        %826 = vrot.lane.b32.xlu0 %v816, 8
        %v827 = vpop.permute.xlu0 %826
        %828 = vrot.lane.b32.xlu0 %v818, 8
        %v829 = vpop.permute.xlu0 %828
        %vm832 = vcmask 31744
        %v833 = vsel %vm832, %v813, %v820
        %v834 = vsel %vm832, %v810, %v822
        %vm835 = vcmask 64512
        %v836 = vsel %vm835, %v833, %v827
        %v837 = vsel %vm835, %v834, %v829
        %vm838 = vcmask 97280
        %v839 = vsel %vm838, %v836, 0.0
        %v840 = vsel %vm838, %v837, 0.0
        %v841 = vpack.c.bf16 %v840, %v839
        %v842 = vlaneseq
        %v843 = vshrl.u32 %v842, 7
        %v844 = vsub.s32 0, %v843
        %v845 = vrot.slane %v203, %v844
        %v848 = vunpack.c.l.b16 %v284
        %v849 = vunpack.c.l.b16 %v285
        %v850 = vpack.c.b16 %v849, %v848
        %vm852 = vcmask 130048
        %v854 = vsel %vm852, %v841, 0
        %856 = vmatprep.subr.bf16.mxu0 0
        %857 = vmatpush1.bf16.msra.mxu0 %v850
        %858 = vmatprep.subr.bf16.mxu0 0
        %859 = vmatpush1.bf16.msra.mxu0 0
        %860 = vmatprep.subr.bf16.mxu0 0
        %861 = vmatpush1.bf16.msra.mxu0 0
        %862 = vmatprep.subr.bf16.mxu0 0
        %863 = vmatpush1.bf16.msra.mxu0 0
        %864 = vmatprep.subr.bf16.mxu0 0
        %865 = vmatpush1.bf16.msra.mxu0 0
        %866 = vmatprep.subr.bf16.mxu0 0
        %867 = vmatpush1.bf16.msra.mxu0 0
        %868 = vmatprep.subr.bf16.mxu0 0
        %869 = vmatpush1.bf16.msra.mxu0 0
        %870 = vmatprep.subr.bf16.mxu0 0
        %871 = vmatpush1.bf16.msra.mxu0 0
        %872 = vmatprep.subr.bf16.mxu0 0
        %873 = vmatpush1.bf16.msra.mxu0 0
        %874 = vmatprep.subr.bf16.mxu0 0
        %875 = vmatpush1.bf16.msra.mxu0 0
        %876 = vmatprep.subr.bf16.mxu0 0
        %877 = vmatpush1.bf16.msra.mxu0 0
        %878 = vmatprep.subr.bf16.mxu0 0
        %879 = vmatpush1.bf16.msra.mxu0 0
        %880 = vmatprep.subr.bf16.mxu0 0
        %881 = vmatpush1.bf16.msra.mxu0 0
        %882 = vmatprep.subr.bf16.mxu0 0
        %883 = vmatpush1.bf16.msra.mxu0 0
        %884 = vmatprep.subr.bf16.mxu0 0
        %885 = vmatpush1.bf16.msra.mxu0 0
        %886 = vmatprep.subr.bf16.mxu0 0
        %887 = vmatpush1.bf16.msra.mxu0 0
        %888 = vmatprep.mubr.bf16.mxu0 0
        %889 = vmatmul.mubr.bf16.gmra.mrb[0].mxu0 %v854
        %v890 = vpop.f32.mrb[0].mxu0
        %v891 = vadd.f32 %v845, %v890
        %v892 = vpop.f32.mrb[0].mxu0
        %v893 = vpop.f32.mrb[0].mxu0
        %v894 = vadd.f32 %v845, %v893
        %v895 = vpop.f32.mrb[0].mxu0
        %896 = vdwg.mxu0
        %v897 = vpack.c.bf16 %v659, %v658
        %v906 = vunpack.c.l.b16 %v286
        %v907 = vunpack.c.l.b16 %v287
        %v908 = vunpack.c.l.b16 %v288
        %v909 = vunpack.c.l.b16 %v289
        %v910 = vunpack.c.l.b16 %v290
        %v911 = vunpack.c.l.b16 %v291
        %v912 = vunpack.c.l.b16 %v292
        %v913 = vunpack.c.l.b16 %v293
        %v914 = vpack.c.b16 %v907, %v906
        %v915 = vpack.c.b16 %v909, %v908
        %v916 = vpack.c.b16 %v911, %v910
        %v917 = vpack.c.b16 %v913, %v912
        %v923 = vsel %vm316, %v897, 0
        %925 = vmatprep.subr.bf16.mxu0 0
        %926 = vmatpush1.bf16.msra.mxu0 %v914
        %927 = vmatprep.subr.bf16.mxu0 0
        %928 = vmatpush1.bf16.msra.mxu0 %v915
        %929 = vmatprep.subr.bf16.mxu0 0
        %930 = vmatpush1.bf16.msra.mxu0 %v916
        %931 = vmatprep.subr.bf16.mxu0 0
        %932 = vmatpush1.bf16.msra.mxu0 %v917
        %933 = vmatprep.subr.bf16.mxu0 0
        %934 = vmatpush1.bf16.msra.mxu0 0
        %935 = vmatprep.subr.bf16.mxu0 0
        %936 = vmatpush1.bf16.msra.mxu0 0
        %937 = vmatprep.subr.bf16.mxu0 0
        %938 = vmatpush1.bf16.msra.mxu0 0
        %939 = vmatprep.subr.bf16.mxu0 0
        %940 = vmatpush1.bf16.msra.mxu0 0
        %941 = vmatprep.subr.bf16.mxu0 0
        %942 = vmatpush1.bf16.msra.mxu0 0
        %943 = vmatprep.subr.bf16.mxu0 0
        %944 = vmatpush1.bf16.msra.mxu0 0
        %945 = vmatprep.subr.bf16.mxu0 0
        %946 = vmatpush1.bf16.msra.mxu0 0
        %947 = vmatprep.subr.bf16.mxu0 0
        %948 = vmatpush1.bf16.msra.mxu0 0
        %949 = vmatprep.subr.bf16.mxu0 0
        %950 = vmatpush1.bf16.msra.mxu0 0
        %951 = vmatprep.subr.bf16.mxu0 0
        %952 = vmatpush1.bf16.msra.mxu0 0
        %953 = vmatprep.subr.bf16.mxu0 0
        %954 = vmatpush1.bf16.msra.mxu0 0
        %955 = vmatprep.subr.bf16.mxu0 0
        %956 = vmatpush1.bf16.msra.mxu0 0
        %957 = vmatprep.mubr.bf16.mxu0 0
        %958 = vmatmul.mubr.bf16.gmra.mrb[0].mxu0 %v923
        %v959 = vpop.f32.mrb[0].mxu0
        %v960 = vadd.f32 0.0, %v959
        %v961 = vpop.f32.mrb[0].mxu0
        %v962 = vpop.f32.mrb[0].mxu0
        %v963 = vadd.f32 0.0, %v962
        %v964 = vpop.f32.mrb[0].mxu0
        %965 = vdwg.mxu0
        %v966 = vadd.f32 %v891, %v960
        %v967 = vadd.f32 %v894, %v963
        %v968 = vmax.f32 %v966, 0.0
        %v969 = vmax.f32 %v967, 0.0
        %v970 = vsel %vm832, %v968, 0.0
        %971 = vadd.xlane.f32.xlu0 %v970
        %v972 = vpop.xlane.xlu0 %971
        %v973 = vsel %vm832, %v969, 0.0
        %974 = vadd.xlane.f32.xlu0 %v973
        %v975 = vpop.xlane.xlu0 %974
        %v976 = vrcp.pop 4.0
        %v977 = vmul.f32 %v972, %v976
        %v978 = vmul.f32 %v975, %v976
        %v979 = vmul.f32 %v198, %v977
        %v980 = vmul.f32 %v199, %v978
        %v981 = vsel %vm316, %v979, 0.0
        %v982 = vsel %vm316, %v980, 0.0
        %v983 = vadd.f32 %v981, %v982
        %v984 = vrot.slane %v983, 4
        %v985 = vadd.f32 %v983, %v984
        %v986 = vrot.slane %v985, 2
        %v987 = vadd.f32 %v985, %v986
        %v988 = vrot.slane %v987, 1
        %v989 = vadd.f32 %v987, %v988
        %vm990 = vcmask 516096
        %991 = vst.msk [vmem:[%s189] sm:$0x1] %vm990, %v989
        %s992 = sand.u32 %s115, 1
        %s993 = scalar_lea.sflag [#allocation3], %s992
        %s994 = sand.u32 %s115, 1
        %s995 = scalar_lea.vmem [#allocation2], %s994
        // Predicated region
        $region37: #{apply.1} parent=35 // pred_check
          %p996 = pneg %p125
        $region38: #{apply.1} parent=35 // pred_check_branch
          %998 = sbr.rel (%p996) target = $region40
        $region39: #{apply.1} parent=35 // pred_region
          %s1000 = ssub.s32 16, 16
          %1001 = vsyncadd %s993, %s1000
          %s1002 = smul.addr %s18, 16
          %s1003 = scalar_lea.hbm %s4, %s1002
          %s1005 = sshll.u32 %s995, 4
          %s1006 = int_to_ptr.vmem [resolvable:$true] %s1005
          %1008 = dma.vmem_to_hbm [thread:$0]  %s1006, 16, %s1003, %s993
        $region40: #{apply.1} parent=35 // pred_fallthru
          _
      $region36: #{apply.1} parent=5 // pred_fallthru
        _
      %p1009 = scmp.le.s32.totalorder 2, %s13
      // Predicated region
      $region41: #{apply.1} parent=5 // pred_check
        %p1010 = pneg %p1009
      $region42: #{apply.1} parent=5 // pred_check_branch
        %1012 = sbr.rel (%p1010) target = $region44
      $region43: #{apply.1} parent=5 // pred_region
        %s1013 = ssub.s32 %s13, 2
        // Predicated region
        $region45: #{apply.1} parent=43 // pred_check
          %p1014 = pneg %p131
        $region46: #{apply.1} parent=43 // pred_check_branch
          %1016 = sbr.rel (%p1014) target = $region48
        $region47: #{apply.1} parent=43 // pred_region
          %s1017 = sand.u32 %s116, 1
          %s1018 = scalar_lea.sflag [#allocation3], %s1017
          %s1019 = sand.u32 %s116, 1
          %s1020 = scalar_lea.vmem [#allocation2], %s1019
          %1021 = dma.done %s1018, 16
        $region48: #{apply.1} parent=43 // pred_fallthru
          _
      $region44: #{apply.1} parent=5 // pred_fallthru
        _
    $region6: #{apply.1} parent=1 // loop_footer
      %s17 = sadd.s32 1, %s13
    $region7: #{apply.1} parent=1 // loop_footer_branch
      %12 = sbr.rel target = $region3
    $region8: #{apply.1} parent=1 // loop_exit
      _
    %1022 = vsyncpa [#allocation3], 1
    %s1023 = scalar_lea.sflag [#allocation3], 1
    %1024 = vsyncpa %s1023, 1

</llo_original>
